<compile_context>
chip_gen: v5e
topology: v5e:2x2
jax: 0.10.0
libtpu: 0.0.40
codegen_flags: <defaults>
</compile_context>

<pallas_src>
import math

import jax
import jax.numpy as jnp
from jax.experimental import pallas as pl
from jax.experimental.pallas import tpu as pltpu

BN_EPS = 1e-5
TM_TARGET = 2048                      # max rows per grid step
VMEM_TILE_BUDGET = 24 * 1024 * 1024   # keep tiles well under v7x's 32 MiB scoped VMEM


def _tile_vmem_bytes(tm: int, k: int, n: int, itemsize: int) -> int:
    # Double-buffered x tile + double-buffered out tile + resident weight/bias
    # (weight/bias conservatively counted twice: default pipelining keeps two
    # buffers even for constant-index blocks).
    return itemsize * (2 * tm * k + 2 * tm * n + 2 * (k * n + n))


def _choose_tm(m: int, k: int, n: int, itemsize: int) -> int:
    """Row-tile size: big enough to amortize per-step overhead, small enough to
    fit VMEM and (for large M) keep >= 4 grid steps for v7x megacore sharding."""
    tm = min(m, TM_TARGET)
    while tm > 512 and pl.cdiv(m, tm) < 4:          # >=4 steps => both TCs on v7x
        tm //= 2
    while tm > 8 and _tile_vmem_bytes(tm, k, n, itemsize) > VMEM_TILE_BUDGET:
        tm //= 2
    if tm != m:
        # Block dims must be a multiple of 8 or equal the full array dim.
        tm = max(8, (tm // 8) * 8)
    return tm


def spatial_embeddings_kernel(x_ref, w_ref, b_ref, o_ref):
    # Linear projection on the MXU (eval-mode BatchNorm already folded into w/b).
    y = jnp.dot(x_ref[...], w_ref[...], preferred_element_type=jnp.float32)
    y = y + b_ref[...]                           # [TM, N] + [1, N]
    # Softsign with exact division: free in this HBM-bound regime and keeps
    # bit-close parity with the reference (no approx reciprocal).
    y = y / (1.0 + jnp.abs(y))
    o_ref[...] = y.astype(o_ref.dtype)


def fold_batchnorm(params, eps: float = BN_EPS):
    """Fold eval-mode BatchNorm1d (running stats) into the Linear weight/bias.

    Call once per checkpoint — hoisted out of the per-step inference path."""
    scale = params["gamma"] * jax.lax.rsqrt(params["running_var"] + eps)    # [1, N]
    w_f = params["w"] * scale                                               # [K, N]
    b_f = (params["b"] - params["running_mean"]) * scale + params["beta"]   # [1, N]
    return {"w_folded": w_f, "b_folded": b_f}


def spatial_embeddings_forward(x, mask, params):
    """x: [B, T, input_size]; mask: [B, T] (unused in eval mode).

    `params` is preferably the output of fold_batchnorm() (fold hoisted out of
    the per-call path); raw parameters are also accepted and folded lazily."""
    # TODO(synk): training-mode MaskedNorm (masked_select/masked_scatter with
    # live batch statistics) is data-dependent compaction; only eval mode is
    # implemented, where the mask does not affect the result.
    del mask
    B, T, K = x.shape
    if "w_folded" in params:
        w_f, b_f = params["w_folded"], params["b_folded"]
    else:
        folded = fold_batchnorm(params)   # prefer folding once, outside this call
        w_f, b_f = folded["w_folded"], folded["b_folded"]

    N = w_f.shape[1]
    M = B * T
    itemsize = jnp.dtype(x.dtype).itemsize

    x2d = x.reshape(M, K)                 # no padding, no extra HBM round trip
    TM = _choose_tm(M, K, N, itemsize)
    grid = (pl.cdiv(M, TM),)              # ragged last tile handled by Pallas masking

    vmem_need = _tile_vmem_bytes(TM, K, N, itemsize)
    vmem_limit = int(min(max(2 * vmem_need, 8 * 1024 * 1024), 32 * 1024 * 1024))

    cost = pl.CostEstimate(
        flops=2 * M * K * N,
        transcendentals=0,
        bytes_accessed=itemsize * (M * K + K * N + N + M * N),
    )

    out = pl.pallas_call(
        spatial_embeddings_kernel,
        out_shape=jax.ShapeDtypeStruct((M, N), x.dtype),
        grid=grid,
        in_specs=[
            pl.BlockSpec((TM, K), lambda i: (i, 0)),   # streamed x row-tile
            pl.BlockSpec((K, N), lambda i: (0, 0)),    # resident folded weight
            pl.BlockSpec((1, N), lambda i: (0, 0)),    # resident folded bias
        ],
        out_specs=pl.BlockSpec((TM, N), lambda i: (i, 0)),   # true-N output, no pad
        compiler_params=pltpu.CompilerParams(
            dimension_semantics=("parallel",),
            vmem_limit_bytes=vmem_limit,
        ),
        cost_estimate=cost,
    )(x2d, w_f, b_f)

    return out.reshape(B, T, N)


def init_params(key, input_size, embedding_dim):
    """Deterministic synthetic parameters (nn.Linear + BatchNorm1d shapes)."""
    k_w, k_b, k_g, k_be, k_m, k_v = jax.random.split(key, 6)
    bound = 1.0 / math.sqrt(input_size)
    # PyTorch Linear weight is [out, in]; stored transposed [in, out] for the kernel.
    w = jax.random.uniform(k_w, (input_size, embedding_dim), jnp.float32,
                           minval=-bound, maxval=bound)
    b = jax.random.uniform(k_b, (1, embedding_dim), jnp.float32,
                           minval=-bound, maxval=bound)
    gamma = 1.0 + 0.1 * jax.random.normal(k_g, (1, embedding_dim), jnp.float32)
    beta = 0.1 * jax.random.normal(k_be, (1, embedding_dim), jnp.float32)
    running_mean = 0.1 * jax.random.normal(k_m, (1, embedding_dim), jnp.float32)
    running_var = jnp.abs(1.0 + 0.1 * jax.random.normal(k_v, (1, embedding_dim),
                                                        jnp.float32))
    return dict(w=w, b=b, gamma=gamma, beta=beta,
                running_mean=running_mean, running_var=running_var)


def reference_forward(x, params):
    """Plain-JAX reference in the exact module order (linear -> eval BN -> softsign)."""
    B, T, K = x.shape
    y = x.reshape(-1, K) @ params["w"] + params["b"]
    inv_std = 1.0 / jnp.sqrt(params["running_var"] + BN_EPS)
    y = (y - params["running_mean"]) * inv_std * params["gamma"] + params["beta"]
    y = y / (1.0 + jnp.abs(y))
    return y.reshape(B, T, -1)


if __name__ == "__main__":
    key = jax.random.PRNGKey(0)
    k_x, k_p = jax.random.split(key)

    B, T = 2, 8
    input_size, embedding_dim, num_heads = 16, 32, 4   # num_heads only used by group norm

    x = jax.random.normal(k_x, (B, T, input_size), jnp.float32)
    mask = jnp.ones((B, T), jnp.bool_)
    params = init_params(k_p, input_size, embedding_dim)

    folded = fold_batchnorm(params)                 # once per checkpoint, not per call
    forward = jax.jit(spatial_embeddings_forward)

    out = forward(x, mask, folded)
    out = jax.block_until_ready(out)

    ref = reference_forward(x, params)
    assert out.shape == (B, T, embedding_dim)
    # Tolerance budget: BN-fold reassociation + TPU default-precision f32 matmul
    # (bf16 MXU passes) applied to folded vs. unfolded weights.  The previous
    # approx-reciprocal error source has been removed (exact softsign division).
    max_err = float(jnp.max(jnp.abs(out - ref)))
    assert jnp.allclose(out, ref, atol=2e-3, rtol=2e-3), max_err

    print("KERNEL_OK")
</pallas_src>

<mosaic_0001>
module attributes {stable_mosaic.version = 11 : i64} {
  func.func @spatial_embeddings_kernel(%arg0: i32, %arg1: memref<16x16xf32, #tpu.memory_space<vmem>>, %arg2: memref<16x32xf32, #tpu.memory_space<vmem>>, %arg3: memref<1x32xf32, #tpu.memory_space<vmem>>, %arg4: memref<16x32xf32, #tpu.memory_space<vmem>>) attributes {dimension_semantics = [#tpu.dimension_semantics<parallel>], iteration_bounds = array<i64: 1>, scalar_prefetch = 0 : i64, scratch_operands = 0 : i64, tpu.core_type = #tpu.core_type<tc>, window_params = [{transform_indices = @transform_0, window_bounds = array<i64: 16, 16>}, {pipeline_mode = #tpu.pipeline_mode<synchronous>, transform_indices = @transform_1, window_bounds = array<i64: 16, 32>}, {pipeline_mode = #tpu.pipeline_mode<synchronous>, transform_indices = @transform_2, window_bounds = array<i64: 1, 32>}, {transform_indices = @transform_3, window_bounds = array<i64: 16, 32>}]} {
    %c0 = arith.constant 0 : index
    %c0_0 = arith.constant 0 : index
    %0 = vector.load %arg1[%c0, %c0_0] : memref<16x16xf32, #tpu.memory_space<vmem>>, vector<16x16xf32>
    %c0_1 = arith.constant 0 : index
    %c0_2 = arith.constant 0 : index
    %1 = vector.load %arg2[%c0_1, %c0_2] : memref<16x32xf32, #tpu.memory_space<vmem>>, vector<16x32xf32>
    %cst = arith.constant dense<0.000000e+00> : vector<16x32xf32>
    %2 = tpu.matmul %0, %1, %cst {dimension_numbers = #tpu.dot_dimension_numbers<[1], [0], [0], [1], [0, 0, 1, 1], [], []>} : vector<16x16xf32>, vector<16x32xf32>, vector<16x32xf32> -> vector<16x32xf32>
    %c0_3 = arith.constant 0 : index
    %c0_4 = arith.constant 0 : index
    %3 = vector.load %arg3[%c0_3, %c0_4] : memref<1x32xf32, #tpu.memory_space<vmem>>, vector<1x32xf32>
    %4 = vector.broadcast %3 : vector<1x32xf32> to vector<16x32xf32>
    %5 = arith.addf %2, %4 : vector<16x32xf32>
    %6 = math.absf %5 : vector<16x32xf32>
    %cst_5 = arith.constant 1.000000e+00 : f32
    %7 = vector.broadcast %cst_5 : f32 to vector<16x32xf32>
    %8 = arith.addf %7, %6 : vector<16x32xf32>
    %9 = arith.divf %5, %8 : vector<16x32xf32>
    %c0_6 = arith.constant 0 : index
    %c0_7 = arith.constant 0 : index
    %10 = vector.load %arg4[%c0_6, %c0_7] : memref<16x32xf32, #tpu.memory_space<vmem>>, vector<16x32xf32>
    tpu.vector_store %arg4[%c0_6, %c0_7], %9 {strides = array<i32>} : memref<16x32xf32, #tpu.memory_space<vmem>>, vector<16x32xf32>,
    return
  }
  func.func @transform_0(%arg0: i32) -> (i32, i32) {
    %c0_i32 = arith.constant 0 : i32
    %c0_i32_0 = arith.constant 0 : i32
    return %arg0, %c0_i32 : i32, i32
  }
  func.func @transform_1(%arg0: i32) -> (i32, i32) {
    %c0_i32 = arith.constant 0 : i32
    %c0_i32_0 = arith.constant 0 : i32
    %c0_i32_1 = arith.constant 0 : i32
    return %c0_i32, %c0_i32_0 : i32, i32
  }
  func.func @transform_2(%arg0: i32) -> (i32, i32) {
    %c0_i32 = arith.constant 0 : i32
    %c0_i32_0 = arith.constant 0 : i32
    %c0_i32_1 = arith.constant 0 : i32
    return %c0_i32, %c0_i32_0 : i32, i32
  }
  func.func @transform_3(%arg0: i32) -> (i32, i32) {
    %c0_i32 = arith.constant 0 : i32
    %c0_i32_0 = arith.constant 0 : i32
    return %arg0, %c0_i32 : i32, i32
  }
}

</mosaic_0001>

<llo_original>
// kernel: spatial_embeddings_forward.1
$region0: #{spatial_embeddings_forward.1}
  #allocation0 [shape = 'u32[]', space=smem, size = 0x4, offset = 0x4, fixed_abs, tag = 'smem constant byte address 0x4 - core index']
  #allocation1 [shape = 'u32[72,128]{1,0:T(1,128)}', space=vmem, size = 0x9000, scoped, tag = 'internal scratch']
  %s0 = inlined_call_operand.hbm [shape: f32[16,16], index: 0, kind: input, shape index: {}]
  %s1 = inlined_call_operand.hbm [shape: f32[16,32], index: 1, kind: input, shape index: {}]
  %s2 = inlined_call_operand.vmem [shape: f32[1,32], index: 2, kind: input, shape index: {}]
  %s3 = inlined_call_operand.hbm [shape: f32[16,32], index: 3, kind: output, shape index: {}]
  %s4 = sld [smem:[#allocation0]]
  $region30: #{spatial_embeddings_forward.1} parent=0
    _
  %s6 = ssub.s32 1, %s4
  %s7 = scalar_select 0, %s6, %s4
  $region1: #{spatial_embeddings_forward.1} parent=0
    #allocation2 [shape = 'u8[8192]{0}', space=vmem, size = 0x2000, scoped, tag = 'input window, operand 0, single buffered']
    #allocation3 [shape = 's32[1]{0}', space=sflag, size = 0x4, scoped, tag = 'scoped memory for spatial_embeddings_forward.1']
    #allocation4 [shape = 's32[1]{0}', space=sflag, size = 0x4, scoped, tag = 'scoped memory for spatial_embeddings_forward.1']
    #allocation5 [shape = 'u8[8192]{0}', space=vmem, size = 0x2000, scoped, tag = 'input window, operand 1, single buffered']
    #allocation6 [shape = 's32[1]{0}', space=sflag, size = 0x4, scoped, tag = 'scoped memory for spatial_embeddings_forward.1']
    #allocation7 [shape = 'u8[8192]{0}', space=vmem, size = 0x2000, scoped, tag = 'output window, operand 0, single buffered']
    %8 = vsyncpa [#allocation3], 0
    %9 = vsyncpa [#allocation6], 0
    %10 = vsyncpa [#allocation4], 0
    // Predicated region
    $region2: #{spatial_embeddings_forward.1} parent=1 // pred_check
      _
    $region3: #{spatial_embeddings_forward.1} parent=1 // pred_check_branch
      %12 = sbr.rel (0) target = $region5
    $region4: #{spatial_embeddings_forward.1} parent=1 // pred_region
      %14 = vsyncadd [#allocation3], 0
      %s15 = sshll.u32 %s0, 4
      %s16 = int_to_ptr.hbm [resolvable:$true] %s15
      %s17 = sshll.u32 [#allocation2], 4
      %s18 = int_to_ptr.vmem [resolvable:$true] %s17
      %23 = dma.hbm_to_vmem [thread:$0]  %s16, 256, %s18, [#allocation3], 128, 128, 8
    $region5: #{spatial_embeddings_forward.1} parent=1 // pred_fallthru
      _
    // Predicated region
    $region6: #{spatial_embeddings_forward.1} parent=1 // pred_check
      _
    $region7: #{spatial_embeddings_forward.1} parent=1 // pred_check_branch
      %25 = sbr.rel (0) target = $region9
    $region8: #{spatial_embeddings_forward.1} parent=1 // pred_region
      %27 = vsyncadd [#allocation6], 0
      %s28 = sshll.u32 %s1, 4
      %s29 = int_to_ptr.hbm [resolvable:$true] %s28
      %s30 = sshll.u32 [#allocation5], 4
      %s31 = int_to_ptr.vmem [resolvable:$true] %s30
      %36 = dma.hbm_to_vmem [thread:$0]  %s29, 256, %s31, [#allocation6], 128, 128, 8
    $region9: #{spatial_embeddings_forward.1} parent=1 // pred_fallthru
      _
    // Predicated region
    $region10: #{spatial_embeddings_forward.1} parent=1 // pred_check
      _
    $region11: #{spatial_embeddings_forward.1} parent=1 // pred_check_branch
      %38 = sbr.rel (0) target = $region13
    $region12: #{spatial_embeddings_forward.1} parent=1 // pred_region
      _
    $region13: #{spatial_embeddings_forward.1} parent=1 // pred_fallthru
      _
    // Predicated region
    $region14: #{spatial_embeddings_forward.1} parent=1 // pred_check
      _
    $region15: #{spatial_embeddings_forward.1} parent=1 // pred_check_branch
      %40 = sbr.rel (0) target = $region17
    $region16: #{spatial_embeddings_forward.1} parent=1 // pred_region
      %42 = dma.done [#allocation3], 256
    $region17: #{spatial_embeddings_forward.1} parent=1 // pred_fallthru
      _
    // Predicated region
    $region18: #{spatial_embeddings_forward.1} parent=1 // pred_check
      _
    $region19: #{spatial_embeddings_forward.1} parent=1 // pred_check_branch
      %44 = sbr.rel (0) target = $region21
    $region20: #{spatial_embeddings_forward.1} parent=1 // pred_region
      %46 = dma.done [#allocation6], 256
    $region21: #{spatial_embeddings_forward.1} parent=1 // pred_fallthru
      _
    %v47 = vld [vmem:[#allocation2] sm:$0xff]
    %v48 = vld [vmem:[#allocation2 + $0x8] sm:$0xff]
    %v49 = vld [vmem:[#allocation5] sm:$0xff]
    %v50 = vld [vmem:[#allocation5 + $0x8] sm:$0xff]
    %v51 = vld [vmem:[%s2] sm:$0x1]
    %v53 = vperm.slane %v51, 0
    %vm55 = vcmask 130048
    %v57 = vsel %vm55, %v47, 0
    %v60 = vsel %vm55, %v48, 0
    %62 = vmatpush.msra.mxu0 0.0
    %63 = vmatpush.msra.mxu0 0.0
    %64 = vmatpush.msra.mxu0 0.0
    %65 = vmatpush.msra.mxu0 0.0
    %66 = vmatpush.msra.mxu0 0.0
    %67 = vmatpush.msra.mxu0 0.0
    %68 = vmatpush.msra.mxu0 0.0
    %69 = vmatpush.msra.mxu0 0.0
    %70 = vmatpush.msra.mxu0 0.0
    %71 = vmatpush.msra.mxu0 0.0
    %72 = vmatpush.msra.mxu0 0.0
    %73 = vmatpush.msra.mxu0 0.0
    %74 = vmatpush.msra.mxu0 0.0
    %75 = vmatpush.msra.mxu0 0.0
    %76 = vmatpush.msra.mxu0 %v50
    %77 = vmatpush.msra.mxu0 %v49
    %78 = vmatmul.f32.gmra.mxu0 %v57
    %v79 = vpop.f32.mrf.mxu0
    %v80 = vadd.f32 %v53, %v79
    %81 = vmatmul.f32.gmra.mxu0 %v60
    %v82 = vpop.f32.mrf.mxu0
    %v83 = vadd.f32 %v53, %v82
    %84 = vdwg.mxu0
    %v85 = vand.u32 2147483647, %v80
    %v86 = vand.u32 2147483647, %v83
    %v87 = vadd.f32 %v85, 1.0
    %v88 = vadd.f32 %v86, 1.0
    %v89 = vrcp.pop %v87
    %v90 = vmul.f32 %v87, %v89
    %v91 = vsub.f32 1.0, %v90
    %v92 = vmul.f32 %v89, %v91
    %v93 = vadd.f32 %v89, %v92
    %vm94 = vweird.f32 %v87
    %vm95 = vweird.f32 %v89
    %vm96 = vmor %vm94, %vm95
    %v97 = vsel %vm96, %v89, %v93
    %v98 = vand.u32 2147483647, %v87
    %vm99 = vcmp.eq.f32.partialorder %v98, 8.507059e+37
    %v100 = vand.u32 %v87, 2147483648
    %v101 = vor.u32 1.1754944e-38, %v100
    %v102 = vsel %vm99, %v101, %v97
    %v103 = vmul.f32 %v80, %v102
    %v104 = vrcp.pop %v88
    %v105 = vmul.f32 %v88, %v104
    %v106 = vsub.f32 1.0, %v105
    %v107 = vmul.f32 %v104, %v106
    %v108 = vadd.f32 %v104, %v107
    %vm109 = vweird.f32 %v88
    %vm110 = vweird.f32 %v104
    %vm111 = vmor %vm109, %vm110
    %v112 = vsel %vm111, %v104, %v108
    %v113 = vand.u32 2147483647, %v88
    %vm114 = vcmp.eq.f32.partialorder %v113, 8.507059e+37
    %v115 = vand.u32 %v88, 2147483648
    %v116 = vor.u32 1.1754944e-38, %v115
    %v117 = vsel %vm114, %v116, %v112
    %v118 = vmul.f32 %v83, %v117
    %vm119 = vcmask 261120
    %120 = vst.msk [vmem:[#allocation7] sm:$0xff] %vm119, %v103
    %121 = vst.msk [vmem:[#allocation7 + $0x8] sm:$0xff] %vm119, %v118
    // Predicated region
    $region22: #{spatial_embeddings_forward.1} parent=1 // pred_check
      _
    $region23: #{spatial_embeddings_forward.1} parent=1 // pred_check_branch
      %123 = sbr.rel (0) target = $region25
    $region24: #{spatial_embeddings_forward.1} parent=1 // pred_region
      %125 = vsyncadd [#allocation4], 0
      %s126 = sshll.u32 [#allocation7], 4
      %s127 = int_to_ptr.vmem [resolvable:$true] %s126
      %s128 = sshll.u32 %s3, 4
      %s129 = int_to_ptr.hbm [resolvable:$true] %s128
      %134 = dma.vmem_to_hbm [thread:$0]  %s127, 256, %s129, [#allocation4], 128, 128, 8
    $region25: #{spatial_embeddings_forward.1} parent=1 // pred_fallthru
      _
    // Predicated region
    $region26: #{spatial_embeddings_forward.1} parent=1 // pred_check
      _
    $region27: #{spatial_embeddings_forward.1} parent=1 // pred_check_branch
      %136 = sbr.rel (0) target = $region29
    $region28: #{spatial_embeddings_forward.1} parent=1 // pred_region
      %138 = dma.done [#allocation4], 256
    $region29: #{spatial_embeddings_forward.1} parent=1 // pred_fallthru
      _
    %139 = vsyncpa [#allocation3], 1
    %140 = vsyncpa [#allocation6], 1
    %141 = vsyncpa [#allocation4], 1

</llo_original>
